<compile_context>
chip_gen: v6e
topology: v6e:2x2x1
jax: 0.10.0
libtpu: 0.0.40
codegen_flags: <defaults>
</compile_context>

<pallas_src>
import functools

import jax
import jax.numpy as jnp
from jax.experimental import pallas as pl
from jax.experimental.pallas import tpu as pltpu


def _shifted_lanes(v, s, width):
    """Return w with w[:, i] = v[:, i + s] for a static int shift `s`.

    When the lane width is 128-aligned, use an XLU rotate (wrapped lanes carry
    neighbouring-sample data and are masked by the caller); otherwise fall back
    to a zero-filled concat shift (interior sample boundaries are still masked
    by the caller when several samples are folded into the lane dimension).
    """
    if s == 0:
        return v
    if abs(s) >= width:
        return jnp.zeros_like(v)
    if width % 128 == 0:
        # result[i] = v[i - shift]  =>  shift = -s  (jnp.roll semantics)
        return pltpu.roll(v, shift=(-s) % width, axis=1)
    c = v.shape[0]
    fill = jnp.zeros((c, abs(s)), v.dtype)
    if s > 0:
        return jnp.concatenate([v[:, s:], fill], axis=1)
    return jnp.concatenate([fill, v[:, : width + s]], axis=1)


def _rdsc_kernel(x_ref, wfused_ref, pvec_ref, mask_ref, segred_ref, bcast_ref,
                 pgrp_ref, out_ref, *, kernel_size, dilation, pad, seq_len,
                 batch_tile, c_out, eps, fuse_residual, mxu_dtype):
    """One batch tile (B samples folded into the lane dimension, in VMEM).

    x_ref      : (B, C_in, L)        raw input tile
    wfused_ref : (R, (K[+1])*C_in)   fused [depthwise*pointwise | residual] weights
    pvec_ref   : (R, 3)              col0 = fused biases, col1 = gamma, col2 = beta
    mask_ref   : (K, B*L)            per-shift validity masks ('same' padding)
    segred_ref : (B*L, B_pad)        per-sample lane-mean reduction matrix
    bcast_ref  : (B_pad, B*L)        per-sample lane broadcast matrix
    pgrp_ref   : (2*C_out, 2*C_out)  per-group channel averaging (x2 block-diag)
    out_ref    : (B, C_out, L)
    """
    B, L = batch_tile, seq_len
    BL = B * L

    # ---- fold the batch tile into the lane dim (VMEM only; no extra HBM pass)
    if B == 1:
        x = x_ref[0]                                                # (C_in, L)
    else:
        x = jnp.concatenate([x_ref[b] for b in range(B)], axis=1)  # (C_in, B*L)

    # ---- stacked, shifted RHS for ONE fused MXU matmul ----------------------
    blocks = []
    for j in range(kernel_size):
        s = j * dilation - pad
        xs = _shifted_lanes(x, s, BL)
        if s != 0:
            xs = xs * mask_ref[j:j + 1, :]    # conv padding + sample-boundary mask
        blocks.append(xs)
    if fuse_residual:
        blocks.append(x)                      # residual 1x1 conv rides the same matmul
    rhs = jnp.concatenate(blocks, axis=0)     # ((K[+1])*C_in, B*L)
    if mxu_dtype is not None:
        rhs = rhs.astype(mxu_dtype)           # weights were pre-cast on the host

    zr = jnp.dot(wfused_ref[...], rhs, preferred_element_type=jnp.float32)
    zr = zr + pvec_ref[:, 0:1]                # packed [conv bias ; residual bias]
    z = zr[:c_out]                            # pointwise-conv output (f32)
    res = zr[c_out:] if fuse_residual else x  # identity residual stays f32

    # ---- GroupNorm stats: per-(channel, sample) lane means via a slim matmul,
    #      then per-group channel averaging.  Kept in f32 (E[z^2] - m^2). ------
    stats = jnp.concatenate([z, z * z], axis=0)                     # (2C_out, BL)
    red = jnp.dot(stats, segred_ref[...],
                  preferred_element_type=jnp.float32)               # (2C_out, B_pad)
    gavg = jnp.dot(pgrp_ref[...], red,
                   preferred_element_type=jnp.float32)              # (2C_out, B_pad)
    mean = gavg[:c_out]
    var = gavg[c_out:] - mean * mean
    inv_std = jax.lax.rsqrt(var + eps)                              # L-fold fewer rsqrt
    gamma = pvec_ref[:c_out, 1:2]
    beta = pvec_ref[:c_out, 2:3]
    scale = gamma * inv_std                                         # (C_out, B_pad)
    shift = beta - mean * scale
    ssb = jnp.dot(jnp.concatenate([scale, shift], axis=0), bcast_ref[...],
                  preferred_element_type=jnp.float32)               # (2C_out, BL)

    h = jnp.maximum(z * ssb[:c_out] + ssb[c_out:], 0.0)             # GN + ReLU
    y = (h + res).astype(out_ref.dtype)                             # (C_out, B*L)

    # ---- un-fold: one (C_out, L) store per sample of the tile ---------------
    if B == 1:
        out_ref[0] = y
    else:
        for b in range(B):
            out_ref[b] = y[:, b * L:(b + 1) * L]


def _pick_batch_tile(n, l, *, target_lanes=512, max_lanes=2048):
    """Choose how many batch samples to fold into the lane dimension.

    Preference order: lane-dense stores (B*L % 128 == 0), keep >= 2 grid steps
    (v7x has 2 TensorCores), reach >= target_lanes to amortize per-step
    overhead, and among those pick the smallest tile that does (else widest).
    """
    divs = [d for d in range(1, n + 1) if n % d == 0 and d * l <= max_lanes]
    if not divs:
        return 1

    def key(d):
        lanes = d * l
        return (lanes % 128 == 0,
                (n // d) >= 2,
                lanes >= target_lanes,
                -lanes if lanes >= target_lanes else lanes)

    return max(divs, key=key)


def residual_dsconv1d(x, params, *, kernel_size, dilation, num_groups=16,
                      eps=1e-5, batch_tile=None, mxu_dtype=jnp.bfloat16):
    """x: (N, C_in, L) float32 -> (N, C_out, L) float32.

    mxu_dtype: dtype for the fused conv/residual matmul operands (default
    bf16, MXU-native on v5e/v6e/v7x; accumulation and GroupNorm statistics are
    always f32).  Pass None for exact f32 semantics.
    """
    N, C_in, L = x.shape
    C_out = params["w_pw"].shape[0]
    assert C_out % num_groups == 0, "GroupNorm requires C_out % num_groups == 0"
    assert (kernel_size - 1) * dilation % 2 == 0, \
        "module implicitly requires same-length conv output"
    gs = C_out // num_groups
    pad = (kernel_size - 1) * dilation // 2
    fuse_residual = "w_res" in params
    if not fuse_residual:
        assert C_in == C_out, "identity residual needs in_channels == out_channels"

    B = batch_tile if batch_tile is not None else _pick_batch_tile(N, L)
    assert N % B == 0
    NB, BL = N // B, B * L
    B_pad = ((B + 7) // 8) * 8          # pad the tiny stats dim for clean layout
    # TODO(synk): for very long L (a single sample exceeding the VMEM budget) a
    # two-phase GroupNorm reduction over an 'arbitrary' L-tiling grid axis is
    # required; not implemented here.

    f32 = jnp.float32
    w_dw = params["w_dw"].astype(f32)          # (C_in, K)
    b_dw = params["b_dw"].astype(f32)          # (C_in, 1)
    w_pw = params["w_pw"].astype(f32)          # (C_out, C_in)
    b_pw = params["b_pw"].astype(f32)          # (C_out, 1)
    gamma = params["gamma"].astype(f32)        # (C_out, 1)
    beta = params["beta"].astype(f32)          # (C_out, 1)

    # ---- fold depthwise weights into the pointwise conv (host-side, tiny) ----
    w_conv = jnp.concatenate(
        [w_pw * w_dw[:, j][None, :] for j in range(kernel_size)], axis=1)  # (C_out, K*C_in)
    b_eff = w_pw @ b_dw + b_pw                                             # (C_out, 1)
    if fuse_residual:
        w_res = params["w_res"].astype(f32)
        b_res = params["b_res"].astype(f32)
        w_fused = jnp.concatenate(
            [jnp.concatenate([w_conv, jnp.zeros((C_out, C_in), f32)], axis=1),
             jnp.concatenate([jnp.zeros((C_out, kernel_size * C_in), f32), w_res],
                             axis=1)],
            axis=0)                                            # (2C_out, (K+1)*C_in)
        zpad = jnp.zeros((C_out, 1), f32)
        pvec = jnp.concatenate(
            [jnp.concatenate([b_eff, b_res], axis=0),
             jnp.concatenate([gamma, zpad], axis=0),
             jnp.concatenate([beta, zpad], axis=0)], axis=1)   # (2C_out, 3)
    else:
        w_fused = w_conv                                       # (C_out, K*C_in)
        pvec = jnp.concatenate([b_eff, gamma, beta], axis=1)   # (C_out, 3)
    if mxu_dtype is not None:
        w_fused = w_fused.astype(mxu_dtype)                    # cast once on host

    # ---- per-shift validity masks ('same' padding + folded sample boundaries)
    pos = jnp.tile(jnp.arange(L, dtype=jnp.int32), B)
    shift_mask = jnp.stack(
        [((pos + (j * dilation - pad) >= 0)
          & (pos + (j * dilation - pad) < L)).astype(f32)
         for j in range(kernel_size)], axis=0)                 # (K, BL)

    # ---- slim GroupNorm reduction / broadcast matrices (replace (BL,BL) avg) -
    seg = jnp.kron(jnp.eye(B, dtype=f32), jnp.ones((L, 1), f32))       # (BL, B)
    segred = jnp.pad(seg / L, ((0, 0), (0, B_pad - B)))                # (BL, B_pad)
    bcast = jnp.pad(seg.T, ((0, B_pad - B), (0, 0)))                   # (B_pad, BL)
    pgrp = jnp.kron(jnp.eye(num_groups, dtype=f32),
                    jnp.ones((gs, gs), f32) / gs)                      # (C_out, C_out)
    pgrp2 = jnp.kron(jnp.eye(2, dtype=f32), pgrp)                      # (2C_out, 2C_out)

    kernel = functools.partial(
        _rdsc_kernel, kernel_size=kernel_size, dilation=dilation, pad=pad,
        seq_len=L, batch_tile=B, c_out=C_out, eps=eps,
        fuse_residual=fuse_residual, mxu_dtype=mxu_dtype)

    # NOTE: constant operands are tiny after removing the (BL,BL) averaging
    # matrix, so single-buffering them (pl.Buffered(1)) is no longer a
    # meaningful VMEM lever and is skipped.
    def _const2d(a):
        return pl.BlockSpec(a.shape, lambda n: (0, 0))

    R, Kc = w_fused.shape
    flops = int(2 * R * Kc * N * L                    # fused conv (+ residual) matmul
                + 2 * (2 * C_out) * N * L * B_pad * 2  # stats reduce + scale/shift bcast
                + 2 * (2 * C_out) ** 2 * N            # group averaging
                + 10 * N * L * C_out)                 # elementwise epilogue
    transcendentals = int(N * C_out)                  # rsqrt per (sample, channel)
    bytes_accessed = int(4 * (x.size + N * C_out * L)
                         + 4 * (w_fused.size + pvec.size + shift_mask.size
                                + segred.size + bcast.size + pgrp2.size))

    out_t = pl.pallas_call(
        kernel,
        out_shape=jax.ShapeDtypeStruct((NB, B, C_out, L), jnp.float32),
        grid_spec=pltpu.PrefetchScalarGridSpec(
            num_scalar_prefetch=0,
            grid=(NB,),
            in_specs=[
                pl.BlockSpec((None, B, C_in, L), lambda n: (n, 0, 0, 0)),  # x tile
                _const2d(w_fused),     # fused depthwise*pointwise (+ residual) weights
                _const2d(pvec),        # packed biases / gamma / beta
                _const2d(shift_mask),  # per-shift validity masks
                _const2d(segred),      # per-sample lane-mean reduction
                _const2d(bcast),       # per-sample lane broadcast
                _const2d(pgrp2),       # per-group channel averaging
            ],
            out_specs=pl.BlockSpec((None, B, C_out, L), lambda n: (n, 0, 0, 0)),
        ),
        compiler_params=pltpu.CompilerParams(
            dimension_semantics=("parallel",),
            # Residency is only a few MiB after the stats-matrix fix, so 32 MiB
            # is ample headroom and safe on v5e/v6e (128 MiB) and v7x (64 MiB).
            vmem_limit_bytes=32 * 1024 * 1024,
        ),
        cost_estimate=pl.CostEstimate(flops=flops,
                                      transcendentals=transcendentals,
                                      bytes_accessed=bytes_accessed),
    )(x.reshape(NB, B, C_in, L), w_fused, pvec, shift_mask, segred, bcast, pgrp2)

    # (NB, B, C_out, L) -> (N, C_out, L) is a free reshape (no transpose).
    return out_t.reshape(N, C_out, L)


def reference_forward(x, params, *, kernel_size, dilation, num_groups=16, eps=1e-5):
    """Pure-JAX reference matching the PyTorch forward semantics."""
    N, C_in, L = x.shape
    C_out = params["w_pw"].shape[0]
    pad = (kernel_size - 1) * dilation // 2
    x_pad = jnp.pad(x, ((0, 0), (0, 0), (pad, pad)))

    y = jnp.zeros((N, C_in, L), jnp.float32)
    for j in range(kernel_size):
        y = y + params["w_dw"][None, :, j:j + 1] * x_pad[:, :, j * dilation: j * dilation + L]
    y = y + params["b_dw"][None, :, :]

    z = jnp.einsum("oc,ncl->nol", params["w_pw"], y) + params["b_pw"][None, :, :]

    gs = C_out // num_groups
    zg = z.reshape(N, num_groups, gs, L)
    mean = zg.mean(axis=(2, 3), keepdims=True)
    var = ((zg - mean) ** 2).mean(axis=(2, 3), keepdims=True)
    zn = ((zg - mean) / jnp.sqrt(var + eps)).reshape(N, C_out, L)
    h = jnp.maximum(zn * params["gamma"][None, :, :] + params["beta"][None, :, :], 0.0)

    if "w_res" in params:
        res = jnp.einsum("oc,ncl->nol", params["w_res"], x) + params["b_res"][None, :, :]
    else:
        res = x
    return h + res


if __name__ == "__main__":
    key = jax.random.PRNGKey(0)
    keys = jax.random.split(key, 16)

    # Tolerance sized so that MXU bf16-pass rounding on any TPU generation
    # passes while real layout/fusion bugs (O(1) errors) are still caught.
    TOL = 2e-2

    # ---- config 1: residual is a 1x1 conv (in_channels != out_channels) -----
    N, C_IN, C_OUT, L, K, DIL = 4, 16, 32, 16, 3, 2
    x = jax.random.normal(keys[0], (N, C_IN, L), dtype=jnp.float32)
    params = {
        "w_dw": 0.3 * jax.random.normal(keys[1], (C_IN, K), jnp.float32),
        "b_dw": 0.1 * jax.random.normal(keys[2], (C_IN, 1), jnp.float32),
        "w_pw": 0.3 * jax.random.normal(keys[3], (C_OUT, C_IN), jnp.float32),
        "b_pw": 0.1 * jax.random.normal(keys[4], (C_OUT, 1), jnp.float32),
        "gamma": 1.0 + 0.1 * jax.random.normal(keys[5], (C_OUT, 1), jnp.float32),
        "beta": 0.1 * jax.random.normal(keys[6], (C_OUT, 1), jnp.float32),
        "w_res": 0.3 * jax.random.normal(keys[7], (C_OUT, C_IN), jnp.float32),
        "b_res": 0.1 * jax.random.normal(keys[8], (C_OUT, 1), jnp.float32),
    }
    ref = reference_forward(x, params, kernel_size=K, dilation=DIL)

    # f32 matmul path
    out = jax.block_until_ready(
        residual_dsconv1d(x, params, kernel_size=K, dilation=DIL, mxu_dtype=None))
    assert out.shape == (N, C_OUT, L), out.shape
    assert jnp.allclose(out, ref, rtol=TOL, atol=TOL), \
        float(jnp.max(jnp.abs(out - ref)))

    # default fast path: bf16 conv/residual matmul, f32 accumulation + stats
    out_bf = jax.block_until_ready(
        residual_dsconv1d(x, params, kernel_size=K, dilation=DIL))
    assert jnp.allclose(out_bf, ref, rtol=5e-2, atol=5e-2), \
        float(jnp.max(jnp.abs(out_bf - ref)))

    # ---- config 2: identity residual (in_channels == out_channels) ----------
    N2, C2, L2, K2, DIL2 = 2, 32, 16, 3, 1
    x2 = jax.random.normal(keys[9], (N2, C2, L2), dtype=jnp.float32)
    params2 = {
        "w_dw": 0.3 * jax.random.normal(keys[10], (C2, K2), jnp.float32),
        "b_dw": 0.1 * jax.random.normal(keys[11], (C2, 1), jnp.float32),
        "w_pw": 0.3 * jax.random.normal(keys[12], (C2, C2), jnp.float32),
        "b_pw": 0.1 * jax.random.normal(keys[13], (C2, 1), jnp.float32),
        "gamma": 1.0 + 0.1 * jax.random.normal(keys[14], (C2, 1), jnp.float32),
        "beta": 0.1 * jax.random.normal(keys[15], (C2, 1), jnp.float32),
    }
    ref2 = reference_forward(x2, params2, kernel_size=K2, dilation=DIL2)
    out2 = jax.block_until_ready(
        residual_dsconv1d(x2, params2, kernel_size=K2, dilation=DIL2, mxu_dtype=None))
    assert out2.shape == (N2, C2, L2), out2.shape
    assert jnp.allclose(out2, ref2, rtol=TOL, atol=TOL), \
        float(jnp.max(jnp.abs(out2 - ref2)))

    print("KERNEL_OK")
</pallas_src>

<mosaic_0001>
module attributes {stable_mosaic.version = 11 : i64} {
  func.func @_rdsc_kernel(%arg0: i32, %arg1: memref<1x2x16x16xf32, #tpu.memory_space<vmem>>, %arg2: memref<64x64xf32, #tpu.memory_space<vmem>>, %arg3: memref<64x3xf32, #tpu.memory_space<vmem>>, %arg4: memref<3x32xf32, #tpu.memory_space<vmem>>, %arg5: memref<32x8xf32, #tpu.memory_space<vmem>>, %arg6: memref<8x32xf32, #tpu.memory_space<vmem>>, %arg7: memref<64x64xf32, #tpu.memory_space<vmem>>, %arg8: memref<1x2x32x16xf32, #tpu.memory_space<vmem>>) attributes {dimension_semantics = [#tpu.dimension_semantics<parallel>], iteration_bounds = array<i64: 2>, scalar_prefetch = 0 : i64, scratch_operands = 0 : i64, tpu.core_type = #tpu.core_type<tc>, window_params = [{transform_indices = @transform_0, window_bounds = array<i64: 1, 2, 16, 16>}, {pipeline_mode = #tpu.pipeline_mode<synchronous>, transform_indices = @transform_1, window_bounds = array<i64: 64, 64>}, {pipeline_mode = #tpu.pipeline_mode<synchronous>, transform_indices = @transform_2, window_bounds = array<i64: 64, 3>}, {pipeline_mode = #tpu.pipeline_mode<synchronous>, transform_indices = @transform_3, window_bounds = array<i64: 3, 32>}, {pipeline_mode = #tpu.pipeline_mode<synchronous>, transform_indices = @transform_4, window_bounds = array<i64: 32, 8>}, {pipeline_mode = #tpu.pipeline_mode<synchronous>, transform_indices = @transform_5, window_bounds = array<i64: 8, 32>}, {pipeline_mode = #tpu.pipeline_mode<synchronous>, transform_indices = @transform_6, window_bounds = array<i64: 64, 64>}, {transform_indices = @transform_7, window_bounds = array<i64: 1, 2, 32, 16>}]} {
    %c0 = arith.constant 0 : index
    %c0_0 = arith.constant 0 : index
    %c0_1 = arith.constant 0 : index
    %c0_2 = arith.constant 0 : index
    %0 = vector.load %arg1[%c0, %c0_0, %c0_1, %c0_2] : memref<1x2x16x16xf32, #tpu.memory_space<vmem>>, vector<1x1x16x16xf32>
    %1 = vector.shape_cast %0 : vector<1x1x16x16xf32> to vector<16x16xf32>
    %c0_3 = arith.constant 0 : index
    %c1 = arith.constant 1 : index
    %c0_4 = arith.constant 0 : index
    %c0_5 = arith.constant 0 : index
    %2 = vector.load %arg1[%c0_3, %c1, %c0_4, %c0_5] : memref<1x2x16x16xf32, #tpu.memory_space<vmem>>, vector<1x1x16x16xf32>
    %3 = vector.shape_cast %2 : vector<1x1x16x16xf32> to vector<16x16xf32>
    %4 = tpu.concatenate %1, %3 in 1 : vector<16x16xf32>, vector<16x16xf32> -> vector<16x32xf32>
    %cst = arith.constant 0.000000e+00 : f32
    %5 = vector.broadcast %cst : f32 to vector<16x2xf32>
    %6 = vector.extract_strided_slice %4 {offsets = [0, 0], sizes = [16, 30], strides = [1, 1]} : vector<16x32xf32> to vector<16x30xf32>
    %7 = tpu.concatenate %5, %6 in 1 : vector<16x2xf32>, vector<16x30xf32> -> vector<16x32xf32>
    %c0_6 = arith.constant 0 : index
    %c0_7 = arith.constant 0 : index
    %8 = vector.load %arg4[%c0_6, %c0_7] : memref<3x32xf32, #tpu.memory_space<vmem>>, vector<1x32xf32>
    %9 = vector.broadcast %8 : vector<1x32xf32> to vector<16x32xf32>
    %10 = arith.mulf %7, %9 : vector<16x32xf32>
    %cst_8 = arith.constant 0.000000e+00 : f32
    %11 = vector.broadcast %cst_8 : f32 to vector<16x2xf32>
    %12 = vector.extract_strided_slice %4 {offsets = [0, 2], sizes = [16, 30], strides = [1, 1]} : vector<16x32xf32> to vector<16x30xf32>
    %13 = tpu.concatenate %12, %11 in 1 : vector<16x30xf32>, vector<16x2xf32> -> vector<16x32xf32>
    %c2 = arith.constant 2 : index
    %c0_9 = arith.constant 0 : index
    %14 = vector.load %arg4[%c2, %c0_9] : memref<3x32xf32, #tpu.memory_space<vmem>>, vector<1x32xf32>
    %15 = vector.broadcast %14 : vector<1x32xf32> to vector<16x32xf32>
    %16 = arith.mulf %13, %15 : vector<16x32xf32>
    %17 = tpu.concatenate %10, %4, %16, %4 in 0 : vector<16x32xf32>, vector<16x32xf32>, vector<16x32xf32>, vector<16x32xf32> -> vector<64x32xf32>
    %c0_10 = arith.constant 0 : index
    %c0_11 = arith.constant 0 : index
    %18 = vector.load %arg2[%c0_10, %c0_11] : memref<64x64xf32, #tpu.memory_space<vmem>>, vector<64x64xf32>
    %cst_12 = arith.constant dense<0.000000e+00> : vector<64x32xf32>
    %19 = tpu.matmul %18, %17, %cst_12 {dimension_numbers = #tpu.dot_dimension_numbers<[1], [0], [0], [1], [0, 0, 1, 1], [], []>} : vector<64x64xf32>, vector<64x32xf32>, vector<64x32xf32> -> vector<64x32xf32>
    %c0_13 = arith.constant 0 : index
    %c0_14 = arith.constant 0 : index
    %20 = vector.load %arg3[%c0_13, %c0_14] : memref<64x3xf32, #tpu.memory_space<vmem>>, vector<64x1xf32>
    %21 = vector.broadcast %20 : vector<64x1xf32> to vector<64x32xf32>
    %22 = arith.addf %19, %21 : vector<64x32xf32>
    %23 = vector.extract_strided_slice %22 {offsets = [0, 0], sizes = [32, 32], strides = [1, 1]} : vector<64x32xf32> to vector<32x32xf32>
    %24 = vector.extract_strided_slice %22 {offsets = [32, 0], sizes = [32, 32], strides = [1, 1]} : vector<64x32xf32> to vector<32x32xf32>
    %25 = arith.mulf %23, %23 : vector<32x32xf32>
    %26 = tpu.concatenate %23, %25 in 0 : vector<32x32xf32>, vector<32x32xf32> -> vector<64x32xf32>
    %c0_15 = arith.constant 0 : index
    %c0_16 = arith.constant 0 : index
    %27 = vector.load %arg5[%c0_15, %c0_16] : memref<32x8xf32, #tpu.memory_space<vmem>>, vector<32x8xf32>
    %cst_17 = arith.constant dense<0.000000e+00> : vector<64x8xf32>
    %28 = tpu.matmul %26, %27, %cst_17 {dimension_numbers = #tpu.dot_dimension_numbers<[1], [0], [0], [1], [0, 0, 1, 1], [], []>} : vector<64x32xf32>, vector<32x8xf32>, vector<64x8xf32> -> vector<64x8xf32>
    %c0_18 = arith.constant 0 : index
    %c0_19 = arith.constant 0 : index
    %29 = vector.load %arg7[%c0_18, %c0_19] : memref<64x64xf32, #tpu.memory_space<vmem>>, vector<64x64xf32>
    %cst_20 = arith.constant dense<0.000000e+00> : vector<64x8xf32>
    %30 = tpu.matmul %29, %28, %cst_20 {dimension_numbers = #tpu.dot_dimension_numbers<[1], [0], [0], [1], [0, 0, 1, 1], [], []>} : vector<64x64xf32>, vector<64x8xf32>, vector<64x8xf32> -> vector<64x8xf32>
    %31 = vector.extract_strided_slice %30 {offsets = [0, 0], sizes = [32, 8], strides = [1, 1]} : vector<64x8xf32> to vector<32x8xf32>
    %32 = vector.extract_strided_slice %30 {offsets = [32, 0], sizes = [32, 8], strides = [1, 1]} : vector<64x8xf32> to vector<32x8xf32>
    %33 = arith.mulf %31, %31 : vector<32x8xf32>
    %34 = arith.subf %32, %33 : vector<32x8xf32>
    %cst_21 = arith.constant 9.99999974E-6 : f32
    %35 = vector.broadcast %cst_21 : f32 to vector<32x8xf32>
    %36 = arith.addf %34, %35 : vector<32x8xf32>
    %37 = math.rsqrt %36 : vector<32x8xf32>
    %c0_22 = arith.constant 0 : index
    %c1_23 = arith.constant 1 : index
    %38 = vector.load %arg3[%c0_22, %c1_23] : memref<64x3xf32, #tpu.memory_space<vmem>>, vector<32x1xf32>
    %c0_24 = arith.constant 0 : index
    %c2_25 = arith.constant 2 : index
    %39 = vector.load %arg3[%c0_24, %c2_25] : memref<64x3xf32, #tpu.memory_space<vmem>>, vector<32x1xf32>
    %40 = vector.broadcast %38 : vector<32x1xf32> to vector<32x8xf32>
    %41 = arith.mulf %40, %37 : vector<32x8xf32>
    %42 = arith.mulf %31, %41 : vector<32x8xf32>
    %43 = vector.broadcast %39 : vector<32x1xf32> to vector<32x8xf32>
    %44 = arith.subf %43, %42 : vector<32x8xf32>
    %45 = tpu.concatenate %41, %44 in 0 : vector<32x8xf32>, vector<32x8xf32> -> vector<64x8xf32>
    %c0_26 = arith.constant 0 : index
    %c0_27 = arith.constant 0 : index
    %46 = vector.load %arg6[%c0_26, %c0_27] : memref<8x32xf32, #tpu.memory_space<vmem>>, vector<8x32xf32>
    %cst_28 = arith.constant dense<0.000000e+00> : vector<64x32xf32>
    %47 = tpu.matmul %45, %46, %cst_28 {dimension_numbers = #tpu.dot_dimension_numbers<[1], [0], [0], [1], [0, 0, 1, 1], [], []>} : vector<64x8xf32>, vector<8x32xf32>, vector<64x32xf32> -> vector<64x32xf32>
    %48 = vector.extract_strided_slice %47 {offsets = [0, 0], sizes = [32, 32], strides = [1, 1]} : vector<64x32xf32> to vector<32x32xf32>
    %49 = arith.mulf %23, %48 : vector<32x32xf32>
    %50 = vector.extract_strided_slice %47 {offsets = [32, 0], sizes = [32, 32], strides = [1, 1]} : vector<64x32xf32> to vector<32x32xf32>
    %51 = arith.addf %49, %50 : vector<32x32xf32>
    %cst_29 = arith.constant 0.000000e+00 : f32
    %52 = vector.broadcast %cst_29 : f32 to vector<32x32xf32>
    %53 = arith.maximumf %51, %52 : vector<32x32xf32>
    %54 = arith.addf %53, %24 : vector<32x32xf32>
    %55 = vector.extract_strided_slice %54 {offsets = [0, 0], sizes = [32, 16], strides = [1, 1]} : vector<32x32xf32> to vector<32x16xf32>
    %c0_30 = arith.constant 0 : index
    %c0_31 = arith.constant 0 : index
    %c0_32 = arith.constant 0 : index
    %c0_33 = arith.constant 0 : index
    %56 = vector.load %arg8[%c0_30, %c0_31, %c0_32, %c0_33] : memref<1x2x32x16xf32, #tpu.memory_space<vmem>>, vector<1x1x32x16xf32>
    %57 = vector.shape_cast %56 : vector<1x1x32x16xf32> to vector<32x16xf32>
    %58 = vector.shape_cast %55 : vector<32x16xf32> to vector<1x1x32x16xf32>
    tpu.vector_store %arg8[%c0_30, %c0_31, %c0_32, %c0_33], %58 {strides = array<i32>} : memref<1x2x32x16xf32, #tpu.memory_space<vmem>>, vector<1x1x32x16xf32>,
    %59 = vector.extract_strided_slice %54 {offsets = [0, 16], sizes = [32, 16], strides = [1, 1]} : vector<32x32xf32> to vector<32x16xf32>
    %c0_34 = arith.constant 0 : index
    %c1_35 = arith.constant 1 : index
    %c0_36 = arith.constant 0 : index
    %c0_37 = arith.constant 0 : index
    %60 = vector.load %arg8[%c0_34, %c1_35, %c0_36, %c0_37] : memref<1x2x32x16xf32, #tpu.memory_space<vmem>>, vector<1x1x32x16xf32>
    %61 = vector.shape_cast %60 : vector<1x1x32x16xf32> to vector<32x16xf32>
    %62 = vector.shape_cast %59 : vector<32x16xf32> to vector<1x1x32x16xf32>
    tpu.vector_store %arg8[%c0_34, %c1_35, %c0_36, %c0_37], %62 {strides = array<i32>} : memref<1x2x32x16xf32, #tpu.memory_space<vmem>>, vector<1x1x32x16xf32>,
    return
  }
  func.func @transform_0(%arg0: i32) -> (i32, i32, i32, i32) {
    %c0_i32 = arith.constant 0 : i32
    %c0_i32_0 = arith.constant 0 : i32
    %c0_i32_1 = arith.constant 0 : i32
    %c0_i32_2 = arith.constant 0 : i32
    return %arg0, %c0_i32, %c0_i32_0, %c0_i32_1 : i32, i32, i32, i32
  }
  func.func @transform_1(%arg0: i32) -> (i32, i32) {
    %c0_i32 = arith.constant 0 : i32
    %c0_i32_0 = arith.constant 0 : i32
    %c0_i32_1 = arith.constant 0 : i32
    return %c0_i32, %c0_i32_0 : i32, i32
  }
  func.func @transform_2(%arg0: i32) -> (i32, i32) {
    %c0_i32 = arith.constant 0 : i32
    %c0_i32_0 = arith.constant 0 : i32
    %c0_i32_1 = arith.constant 0 : i32
    return %c0_i32, %c0_i32_0 : i32, i32
  }
  func.func @transform_3(%arg0: i32) -> (i32, i32) {
    %c0_i32 = arith.constant 0 : i32
    %c0_i32_0 = arith.constant 0 : i32
    %c0_i32_1 = arith.constant 0 : i32
    return %c0_i32, %c0_i32_0 : i32, i32
  }
  func.func @transform_4(%arg0: i32) -> (i32, i32) {
    %c0_i32 = arith.constant 0 : i32
    %c0_i32_0 = arith.constant 0 : i32
    %c0_i32_1 = arith.constant 0 : i32
    return %c0_i32, %c0_i32_0 : i32, i32
  }
  func.func @transform_5(%arg0: i32) -> (i32, i32) {
    %c0_i32 = arith.constant 0 : i32
    %c0_i32_0 = arith.constant 0 : i32
    %c0_i32_1 = arith.constant 0 : i32
    return %c0_i32, %c0_i32_0 : i32, i32
  }
  func.func @transform_6(%arg0: i32) -> (i32, i32) {
    %c0_i32 = arith.constant 0 : i32
    %c0_i32_0 = arith.constant 0 : i32
    %c0_i32_1 = arith.constant 0 : i32
    return %c0_i32, %c0_i32_0 : i32, i32
  }
  func.func @transform_7(%arg0: i32) -> (i32, i32, i32, i32) {
    %c0_i32 = arith.constant 0 : i32
    %c0_i32_0 = arith.constant 0 : i32
    %c0_i32_1 = arith.constant 0 : i32
    %c0_i32_2 = arith.constant 0 : i32
    return %arg0, %c0_i32, %c0_i32_0, %c0_i32_1 : i32, i32, i32, i32
  }
}

</mosaic_0001>

<llo_original>
// kernel: tpu_custom_call.1
$region0: #{tpu_custom_call.1}
  #allocation0 [shape = 'u32[]', space=smem, size = 0x4, offset = 0x4, fixed_abs, tag = 'smem constant byte address 0x4 - core index']
  #allocation1 [shape = 'u32[144,128]{1,0:T(1,128)}', space=vmem, size = 0x12000, scoped, tag = 'internal scratch']
  %s0 = inlined_call_operand.vmem [shape: f32[2,2,16,16], index: 0, kind: input, shape index: {}]
  %s1 = inlined_call_operand.hbm [shape: f32[64,64], index: 1, kind: input, shape index: {}]
  %s2 = inlined_call_operand.vmem [shape: f32[64,3], index: 2, kind: input, shape index: {}]
  %s3 = inlined_call_operand.vmem [shape: f32[3,32], index: 3, kind: input, shape index: {}]
  %s4 = inlined_call_operand.vmem [shape: f32[32,8], index: 4, kind: input, shape index: {}]
  %s5 = inlined_call_operand.vmem [shape: f32[8,32], index: 5, kind: input, shape index: {}]
  %s6 = inlined_call_operand.hbm [shape: f32[64,64], index: 6, kind: input, shape index: {}]
  %s7 = inlined_call_operand.vmem [shape: f32[2,2,32,16], index: 7, kind: output, shape index: {}]
  %s8 = sld [smem:[#allocation0]]
  $region69: #{tpu_custom_call.1} parent=0
    _
  %s10 = ssub.s32 1, %s8
  %s11 = scalar_select 0, %s10, %s8
  $region1: #{tpu_custom_call.1} parent=0
    #allocation2 [shape = 'u8[32768]{0}', space=vmem, size = 0x8000, scoped, tag = 'input window, operand 1, single buffered']
    #allocation3 [shape = 's32[2]{0}', space=sflag, size = 0x8, scoped, tag = 'scoped memory for tpu_custom_call.1']
    #allocation4 [shape = 'u8[32768]{0}', space=vmem, size = 0x8000, scoped, tag = 'input window, operand 6, single buffered']
    #allocation5 [shape = 's32[1]{0}', space=sflag, size = 0x4, scoped, tag = 'scoped memory for tpu_custom_call.1']
    %12 = vsyncpa [#allocation3], 0
    %13 = vsyncpa [#allocation5], 0
    loop: start=0, step=1, limit=4
    $region2: #{tpu_custom_call.1} parent=1 // loop_pre_header
      _
    $region3: #{tpu_custom_call.1} parent=1 // loop_header
      %s15 = sphi 0, %s19
      %p16 = scmp.ge.s32.totalorder %s15, 4
      %s25 = sphi 0, %s27
      %s28 = sphi 0, %s25
      %s29 = sphi 0, %s28
      %s45 = sphi 0, %s29
      %s49 = sphi 0, %s49
      %s51 = sphi 0, %s49
      %s52 = sphi 0, %s51
      %s66 = sphi 0, %s52
      %s70 = sphi 0, %s70
      %s72 = sphi 0, %s70
      %s73 = sphi 0, %s72
      %s87 = sphi 0, %s73
      %s91 = sphi 0, %s91
      %s93 = sphi 0, %s91
      %s94 = sphi 0, %s93
      %s108 = sphi 0, %s94
      %s112 = sphi 0, %s112
      %s114 = sphi 0, %s112
      %s115 = sphi 0, %s114
      %s129 = sphi 0, %s115
      %s133 = sphi 0, %s133
      %s135 = sphi 0, %s133
      %s136 = sphi 0, %s135
      %s150 = sphi 0, %s136
      %s154 = sphi 0, %s154
      %s156 = sphi 0, %s154
      %s157 = sphi 0, %s156
      %s171 = sphi 0, %s157
      %s177 = sphi 0, %s179
      %s180 = sphi 0, %s177
      %s181 = sphi 0, %s180
      %s197 = sphi 0, %s181
    $region4: #{tpu_custom_call.1} parent=1 // loop_header_branch
      %18 = sbr.rel (%p16) target = $region8
    $region5: #{tpu_custom_call.1} parent=1 // loop_body
      %s20 = ssub.s32 %s15, 1
      %s21 = ssub.s32 %s15, 2
      %s22 = sadd.s32 %s15, 1
      %s23 = ssub.s32 %s15, %s22
      %p24 = scmp.eq.s32.totalorder %s23, 0
      %s26 = sadd.s32 %s25, 1
      %s27 = scalar_select %p24, %s25, %s26
      %p30 = pneg %p24
      %p31 = scmp.eq.s32.totalorder %s15, 1
      %p32 = por %p30, %p31
      %p33 = scmp.ne.s32.totalorder %s25, %s28
      %p34 = scmp.eq.s32.totalorder %s15, 0
      %p35 = por %p33, %p34
      %p36 = scmp.ne.s32.totalorder %s25, %s28
      %p37 = scmp.eq.s32.totalorder %s20, 1
      %p38 = por %p36, %p37
      %p39 = scmp.ne.s32.totalorder %s28, %s29
      %p40 = scmp.eq.s32.totalorder %s20, 0
      %p41 = por %p39, %p40
      %p42 = scmp.ne.s32.totalorder %s28, %s29
      %p43 = scmp.eq.s32.totalorder %s21, 1
      %p44 = por %p42, %p43
      %p46 = scmp.ne.s32.totalorder %s29, %s45
      %p47 = scmp.eq.s32.totalorder %s21, 0
      %p48 = por %p46, %p47
      %s50 = sadd.s32 %s49, 1
      %p53 = scmp.eq.s32.totalorder %s15, 1
      %p54 = scmp.ne.s32.totalorder %s49, %s51
      %p55 = scmp.eq.s32.totalorder %s15, 0
      %p56 = por %p54, %p55
      %p57 = scmp.ne.s32.totalorder %s49, %s51
      %p58 = scmp.eq.s32.totalorder %s20, 1
      %p59 = por %p57, %p58
      %p60 = scmp.ne.s32.totalorder %s51, %s52
      %p61 = scmp.eq.s32.totalorder %s20, 0
      %p62 = por %p60, %p61
      %p63 = scmp.ne.s32.totalorder %s51, %s52
      %p64 = scmp.eq.s32.totalorder %s21, 1
      %p65 = por %p63, %p64
      %p67 = scmp.ne.s32.totalorder %s52, %s66
      %p68 = scmp.eq.s32.totalorder %s21, 0
      %p69 = por %p67, %p68
      %s71 = sadd.s32 %s70, 1
      %p74 = scmp.eq.s32.totalorder %s15, 1
      %p75 = scmp.ne.s32.totalorder %s70, %s72
      %p76 = scmp.eq.s32.totalorder %s15, 0
      %p77 = por %p75, %p76
      %p78 = scmp.ne.s32.totalorder %s70, %s72
      %p79 = scmp.eq.s32.totalorder %s20, 1
      %p80 = por %p78, %p79
      %p81 = scmp.ne.s32.totalorder %s72, %s73
      %p82 = scmp.eq.s32.totalorder %s20, 0
      %p83 = por %p81, %p82
      %p84 = scmp.ne.s32.totalorder %s72, %s73
      %p85 = scmp.eq.s32.totalorder %s21, 1
      %p86 = por %p84, %p85
      %p88 = scmp.ne.s32.totalorder %s73, %s87
      %p89 = scmp.eq.s32.totalorder %s21, 0
      %p90 = por %p88, %p89
      %s92 = sadd.s32 %s91, 1
      %p95 = scmp.eq.s32.totalorder %s15, 1
      %p96 = scmp.ne.s32.totalorder %s91, %s93
      %p97 = scmp.eq.s32.totalorder %s15, 0
      %p98 = por %p96, %p97
      %p99 = scmp.ne.s32.totalorder %s91, %s93
      %p100 = scmp.eq.s32.totalorder %s20, 1
      %p101 = por %p99, %p100
      %p102 = scmp.ne.s32.totalorder %s93, %s94
      %p103 = scmp.eq.s32.totalorder %s20, 0
      %p104 = por %p102, %p103
      %p105 = scmp.ne.s32.totalorder %s93, %s94
      %p106 = scmp.eq.s32.totalorder %s21, 1
      %p107 = por %p105, %p106
      %p109 = scmp.ne.s32.totalorder %s94, %s108
      %p110 = scmp.eq.s32.totalorder %s21, 0
      %p111 = por %p109, %p110
      %s113 = sadd.s32 %s112, 1
      %p116 = scmp.eq.s32.totalorder %s15, 1
      %p117 = scmp.ne.s32.totalorder %s112, %s114
      %p118 = scmp.eq.s32.totalorder %s15, 0
      %p119 = por %p117, %p118
      %p120 = scmp.ne.s32.totalorder %s112, %s114
      %p121 = scmp.eq.s32.totalorder %s20, 1
      %p122 = por %p120, %p121
      %p123 = scmp.ne.s32.totalorder %s114, %s115
      %p124 = scmp.eq.s32.totalorder %s20, 0
      %p125 = por %p123, %p124
      %p126 = scmp.ne.s32.totalorder %s114, %s115
      %p127 = scmp.eq.s32.totalorder %s21, 1
      %p128 = por %p126, %p127
      %p130 = scmp.ne.s32.totalorder %s115, %s129
      %p131 = scmp.eq.s32.totalorder %s21, 0
      %p132 = por %p130, %p131
      %s134 = sadd.s32 %s133, 1
      %p137 = scmp.eq.s32.totalorder %s15, 1
      %p138 = scmp.ne.s32.totalorder %s133, %s135
      %p139 = scmp.eq.s32.totalorder %s15, 0
      %p140 = por %p138, %p139
      %p141 = scmp.ne.s32.totalorder %s133, %s135
      %p142 = scmp.eq.s32.totalorder %s20, 1
      %p143 = por %p141, %p142
      %p144 = scmp.ne.s32.totalorder %s135, %s136
      %p145 = scmp.eq.s32.totalorder %s20, 0
      %p146 = por %p144, %p145
      %p147 = scmp.ne.s32.totalorder %s135, %s136
      %p148 = scmp.eq.s32.totalorder %s21, 1
      %p149 = por %p147, %p148
      %p151 = scmp.ne.s32.totalorder %s136, %s150
      %p152 = scmp.eq.s32.totalorder %s21, 0
      %p153 = por %p151, %p152
      %s155 = sadd.s32 %s154, 1
      %p158 = scmp.eq.s32.totalorder %s15, 1
      %p159 = scmp.ne.s32.totalorder %s154, %s156
      %p160 = scmp.eq.s32.totalorder %s15, 0
      %p161 = por %p159, %p160
      %p162 = scmp.ne.s32.totalorder %s154, %s156
      %p163 = scmp.eq.s32.totalorder %s20, 1
      %p164 = por %p162, %p163
      %p165 = scmp.ne.s32.totalorder %s156, %s157
      %p166 = scmp.eq.s32.totalorder %s20, 0
      %p167 = por %p165, %p166
      %p168 = scmp.ne.s32.totalorder %s156, %s157
      %p169 = scmp.eq.s32.totalorder %s21, 1
      %p170 = por %p168, %p169
      %p172 = scmp.ne.s32.totalorder %s157, %s171
      %p173 = scmp.eq.s32.totalorder %s21, 0
      %p174 = por %p172, %p173
      %s175 = ssub.s32 %s15, %s22
      %p176 = scmp.eq.s32.totalorder %s175, 0
      %s178 = sadd.s32 %s177, 1
      %s179 = scalar_select %p176, %s177, %s178
      %p182 = pneg %p176
      %p183 = scmp.eq.s32.totalorder %s15, 1
      %p184 = por %p182, %p183
      %p185 = scmp.ne.s32.totalorder %s177, %s180
      %p186 = scmp.eq.s32.totalorder %s15, 0
      %p187 = por %p185, %p186
      %p188 = scmp.ne.s32.totalorder %s177, %s180
      %p189 = scmp.eq.s32.totalorder %s20, 1
      %p190 = por %p188, %p189
      %p191 = scmp.ne.s32.totalorder %s180, %s181
      %p192 = scmp.eq.s32.totalorder %s20, 0
      %p193 = por %p191, %p192
      %p194 = scmp.ne.s32.totalorder %s180, %s181
      %p195 = scmp.eq.s32.totalorder %s21, 1
      %p196 = por %p194, %p195
      %p198 = scmp.ne.s32.totalorder %s181, %s197
      %p199 = scmp.eq.s32.totalorder %s21, 0
      %p200 = por %p198, %p199
      %p201 = scmp.le.s32.totalorder 1, %s15
      %p202 = scmp.lt.s32.totalorder %s15, 3
      %p203 = pnand %p201, %p202
      %p204 = pneg %p203
      // Predicated region
      $region9: #{tpu_custom_call.1} parent=5 // pred_check
        _
      $region10: #{tpu_custom_call.1} parent=5 // pred_check_branch
        %206 = sbr.rel (%p203) target = $region12
      $region11: #{tpu_custom_call.1} parent=5 // pred_region
        %s207 = ssub.s32 %s15, 1
        // Predicated region
        $region13: #{tpu_custom_call.1} parent=11 // pred_check
          %p208 = pneg %p62
        $region14: #{tpu_custom_call.1} parent=11 // pred_check_branch
          %210 = sbr.rel (%p208) target = $region16
        $region15: #{tpu_custom_call.1} parent=11 // pred_region
          %s212 = ssub.s32 1024, 1024
          %213 = vsyncadd [#allocation3], %s212
          %s214 = sshll.u32 [#allocation2], 4
          %s215 = int_to_ptr.vmem [resolvable:$true] %s214
          %220 = dma.hbm_to_vmem [thread:$0]  %s1, 1024, %s215, [#allocation3], 128, 128, 8
        $region16: #{tpu_custom_call.1} parent=11 // pred_fallthru
          _
        // Predicated region
        $region17: #{tpu_custom_call.1} parent=11 // pred_check
          %p221 = pneg %p83
        $region18: #{tpu_custom_call.1} parent=11 // pred_check_branch
          %223 = sbr.rel (%p221) target = $region20
        $region19: #{tpu_custom_call.1} parent=11 // pred_region
          _
        $region20: #{tpu_custom_call.1} parent=11 // pred_fallthru
          _
        // Predicated region
        $region21: #{tpu_custom_call.1} parent=11 // pred_check
          %p224 = pneg %p104
        $region22: #{tpu_custom_call.1} parent=11 // pred_check_branch
          %226 = sbr.rel (%p224) target = $region24
        $region23: #{tpu_custom_call.1} parent=11 // pred_region
          _
        $region24: #{tpu_custom_call.1} parent=11 // pred_fallthru
          _
        // Predicated region
        $region25: #{tpu_custom_call.1} parent=11 // pred_check
          %p227 = pneg %p125
        $region26: #{tpu_custom_call.1} parent=11 // pred_check_branch
          %229 = sbr.rel (%p227) target = $region28
        $region27: #{tpu_custom_call.1} parent=11 // pred_region
          _
        $region28: #{tpu_custom_call.1} parent=11 // pred_fallthru
          _
        // Predicated region
        $region29: #{tpu_custom_call.1} parent=11 // pred_check
          %p230 = pneg %p146
        $region30: #{tpu_custom_call.1} parent=11 // pred_check_branch
          %232 = sbr.rel (%p230) target = $region32
        $region31: #{tpu_custom_call.1} parent=11 // pred_region
          _
        $region32: #{tpu_custom_call.1} parent=11 // pred_fallthru
          _
        // Predicated region
        $region33: #{tpu_custom_call.1} parent=11 // pred_check
          %p233 = pneg %p167
        $region34: #{tpu_custom_call.1} parent=11 // pred_check_branch
          %235 = sbr.rel (%p233) target = $region36
        $region35: #{tpu_custom_call.1} parent=11 // pred_region
          %s237 = ssub.s32 1024, 1024
          %238 = vsyncadd [#allocation5], %s237
          %s239 = sshll.u32 [#allocation4], 4
          %s240 = int_to_ptr.vmem [resolvable:$true] %s239
          %245 = dma.hbm_to_vmem [thread:$0]  %s6, 1024, %s240, [#allocation5], 128, 128, 8
        $region36: #{tpu_custom_call.1} parent=11 // pred_fallthru
          _
      $region12: #{tpu_custom_call.1} parent=5 // pred_fallthru
        _
      %p246 = scmp.lt.s32.totalorder %s15, 2
      // Predicated region
      $region37: #{tpu_custom_call.1} parent=5 // pred_check
        %p247 = pneg %p246
      $region38: #{tpu_custom_call.1} parent=5 // pred_check_branch
        %249 = sbr.rel (%p247) target = $region40
      $region39: #{tpu_custom_call.1} parent=5 // pred_region
        // Predicated region
        $region41: #{tpu_custom_call.1} parent=39 // pred_check
          %p250 = pneg %p35
        $region42: #{tpu_custom_call.1} parent=39 // pred_check_branch
          %252 = sbr.rel (%p250) target = $region44
        $region43: #{tpu_custom_call.1} parent=39 // pred_region
          %p253 = scmp.lt.s32.totalorder %s15, 1
          %s254 = scalar_select %p253, %s15, 1
          %s255 = smul.addr %s254, 4
          %s256 = smul.addr %s255, 8
          %s257 = scalar_lea.vmem %s0, %s256
        $region44: #{tpu_custom_call.1} parent=39 // pred_fallthru
          _
      $region40: #{tpu_custom_call.1} parent=5 // pred_fallthru
        _
      %p258 = scmp.le.s32.totalorder 1, %s15
      %p259 = scmp.lt.s32.totalorder %s15, 3
      %p260 = pnand %p258, %p259
      %p261 = pneg %p260
      // Predicated region
      $region45: #{tpu_custom_call.1} parent=5 // pred_check
        _
      $region46: #{tpu_custom_call.1} parent=5 // pred_check_branch
        %263 = sbr.rel (%p260) target = $region48
      $region47: #{tpu_custom_call.1} parent=5 // pred_region
        %s264 = ssub.s32 %s15, 1
        // Predicated region
        $region49: #{tpu_custom_call.1} parent=47 // pred_check
          %p265 = pneg %p62
        $region50: #{tpu_custom_call.1} parent=47 // pred_check_branch
          %267 = sbr.rel (%p265) target = $region52
        $region51: #{tpu_custom_call.1} parent=47 // pred_region
          %268 = dma.done [#allocation3], 1024
        $region52: #{tpu_custom_call.1} parent=47 // pred_fallthru
          _
        // Predicated region
        $region53: #{tpu_custom_call.1} parent=47 // pred_check
          %p269 = pneg %p167
        $region54: #{tpu_custom_call.1} parent=47 // pred_check_branch
          %271 = sbr.rel (%p269) target = $region56
        $region55: #{tpu_custom_call.1} parent=47 // pred_region
          %272 = dma.done [#allocation5], 1024
        $region56: #{tpu_custom_call.1} parent=47 // pred_fallthru
          _
        %p273 = scmp.lt.s32.totalorder %s20, 1
        %s274 = scalar_select %p273, %s20, 1
        %s275 = smul.addr %s274, 4
        %s276 = smul.addr %s275, 8
        %s277 = scalar_lea.vmem %s0, %s276
        %p278 = pneg %p41
        %p279 = pneg %p38
        %p280 = pneg %p62
        %p281 = pneg %p59
        %p282 = pneg %p83
        %p283 = pneg %p80
        %p284 = pneg %p104
        %p285 = pneg %p101
        %p286 = pneg %p125
        %p287 = pneg %p122
        %p288 = pneg %p146
        %p289 = pneg %p143
        %p290 = pneg %p167
        %p291 = pneg %p164
        %p292 = pneg %p193
        %p293 = pneg %p190
        %p294 = scmp.lt.s32.totalorder %s20, 1
        %s295 = scalar_select %p294, %s20, 1
        %s296 = smul.addr %s295, 8
        %s297 = smul.addr %s296, 8
        %s298 = scalar_lea.vmem %s7, %s297
        %p299 = scmp.lt.s32.totalorder %s20, 1
        %s300 = scalar_select %p299, %s20, 1
        %s301 = smul.addr %s300, 4
        %s302 = smul.addr %s301, 8
        %s303 = scalar_lea.vmem %s0, %s302
        %p304 = scmp.lt.s32.totalorder %s20, 1
        %s305 = scalar_select %p304, %s20, 1
        %s306 = smul.addr %s305, 8
        %s307 = smul.addr %s306, 8
        %s308 = scalar_lea.vmem %s7, %s307
        %v309 = vld [vmem:[%s303] sm:$0xff]
        %v310 = vld [vmem:[%s303 + $0x8] sm:$0xff]
        %s311 = scalar_lea.vmem %s303, 16
        %v312 = vld [vmem:[%s311] sm:$0xff]
        %v313 = vld [vmem:[%s311 + $0x8] sm:$0xff]
        %316 = vrot.lane.b32.xlu0 %v312, 16
        %v317 = vpop.permute.xlu0 %316
        %318 = vrot.lane.b32.xlu0 %v313, 16
        %v319 = vpop.permute.xlu0 %318
        %vm322 = vcmask 130048
        %v323 = vsel %vm322, %v309, %v317
        %v324 = vsel %vm322, %v310, %v319
        %327 = vrot.lane.b32.xlu0 %v323, 2
        %v328 = vpop.permute.xlu0 %327
        %329 = vrot.lane.b32.xlu0 %v324, 2
        %v330 = vpop.permute.xlu0 %329
        %vm333 = vcmask 15360
        %v334 = vsel %vm333, 0.0, %v328
        %v335 = vsel %vm333, 0.0, %v330
        %v336 = vld [vmem:[%s3] sm:$0x1]
        %v337 = vlaneseq
        %v338 = vshrl.u32 %v337, 7
        %v339 = vsub.s32 0, %v338
        %v340 = vrot.slane %v336, %v339
        %v341 = vmul.f32 %v334, %v340
        %v342 = vmul.f32 %v335, %v340
        %343 = vrot.lane.b32.xlu0 %v323, 126
        %v344 = vpop.permute.xlu0 %343
        %345 = vrot.lane.b32.xlu0 %v324, 126
        %v346 = vpop.permute.xlu0 %345
        %vm349 = vcmask 244736
        %v350 = vsel %vm349, %v344, 0.0
        %v351 = vsel %vm349, %v346, 0.0
        %v352 = vld [vmem:[%s3 + $0x2] sm:$0x1]
        %v353 = vlaneseq
        %v354 = vshrl.u32 %v353, 7
        %v355 = vsub.s32 0, %v354
        %v356 = vrot.slane %v352, %v355
        %v357 = vmul.f32 %v350, %v356
        %v358 = vmul.f32 %v351, %v356
        %v359 = vld [vmem:[#allocation2] sm:$0xff]
        %v360 = vld [vmem:[#allocation2 + $0x8] sm:$0xff]
        %v361 = vld [vmem:[#allocation2 + $0x10] sm:$0xff]
        %v362 = vld [vmem:[#allocation2 + $0x18] sm:$0xff]
        %v363 = vld [vmem:[#allocation2 + $0x20] sm:$0xff]
        %v364 = vld [vmem:[#allocation2 + $0x28] sm:$0xff]
        %v365 = vld [vmem:[#allocation2 + $0x30] sm:$0xff]
        %v366 = vld [vmem:[#allocation2 + $0x38] sm:$0xff]
        %v367 = vld [vmem:[%s2] sm:$0xff]
        %v368 = vld [vmem:[%s2 + $0x8] sm:$0xff]
        %v369 = vld [vmem:[%s2 + $0x10] sm:$0xff]
        %v370 = vld [vmem:[%s2 + $0x18] sm:$0xff]
        %v371 = vld [vmem:[%s2 + $0x20] sm:$0xff]
        %v372 = vld [vmem:[%s2 + $0x28] sm:$0xff]
        %v373 = vld [vmem:[%s2 + $0x30] sm:$0xff]
        %v374 = vld [vmem:[%s2 + $0x38] sm:$0xff]
        %376 = vset.pattern.permute.xlu0 0
        %377 = vperm.xlu0 %376, %v367
        %v378 = vpop.permute.xlu0 %377
        %381 = vset.pattern.permute.xlu0 0
        %382 = vperm.xlu0 %381, %v368
        %v383 = vpop.permute.xlu0 %382
        %386 = vset.pattern.permute.xlu0 0
        %387 = vperm.xlu0 %386, %v369
        %v388 = vpop.permute.xlu0 %387
        %391 = vset.pattern.permute.xlu0 0
        %392 = vperm.xlu0 %391, %v370
        %v393 = vpop.permute.xlu0 %392
        %396 = vset.pattern.permute.xlu0 0
        %397 = vperm.xlu0 %396, %v371
        %v398 = vpop.permute.xlu0 %397
        %401 = vset.pattern.permute.xlu0 0
        %402 = vperm.xlu0 %401, %v372
        %v403 = vpop.permute.xlu0 %402
        %406 = vset.pattern.permute.xlu0 0
        %407 = vperm.xlu0 %406, %v373
        %v408 = vpop.permute.xlu0 %407
        %411 = vset.pattern.permute.xlu0 0
        %412 = vperm.xlu0 %411, %v374
        %v413 = vpop.permute.xlu0 %412
        %vm415 = vcmask 523264
        %v417 = vsel %vm415, %v359, 0
        %v420 = vsel %vm415, %v360, 0
        %v423 = vsel %vm415, %v361, 0
        %v426 = vsel %vm415, %v362, 0
        %v429 = vsel %vm415, %v363, 0
        %v432 = vsel %vm415, %v364, 0
        %v435 = vsel %vm415, %v365, 0
        %v438 = vsel %vm415, %v366, 0
        %440 = vmatprep.subr.mxu0 0.0
        %441 = vmatpush1.msra.mxu0 0.0
        %442 = vmatprep.subr.mxu0 0.0
        %443 = vmatpush1.msra.mxu0 0.0
        %444 = vmatprep.subr.mxu0 0.0
        %445 = vmatpush1.msra.mxu0 0.0
        %446 = vmatprep.subr.mxu0 0.0
        %447 = vmatpush1.msra.mxu0 0.0
        %448 = vmatprep.subr.mxu0 0.0
        %449 = vmatpush1.msra.mxu0 0.0
        %450 = vmatprep.subr.mxu0 0.0
        %451 = vmatpush1.msra.mxu0 0.0
        %452 = vmatprep.subr.mxu0 0.0
        %453 = vmatpush1.msra.mxu0 0.0
        %454 = vmatprep.subr.mxu0 0.0
        %455 = vmatpush1.msra.mxu0 0.0
        %456 = vmatprep.subr.mxu0 0.0
        %457 = vmatpush1.msra.mxu0 %v324
        %458 = vmatprep.subr.mxu0 0.0
        %459 = vmatpush1.msra.mxu0 %v323
        %460 = vmatprep.subr.mxu0 0.0
        %461 = vmatpush1.msra.mxu0 %v358
        %462 = vmatprep.subr.mxu0 0.0
        %463 = vmatpush1.msra.mxu0 %v357
        %464 = vmatprep.subr.mxu0 0.0
        %465 = vmatpush1.msra.mxu0 %v324
        %466 = vmatprep.subr.mxu0 0.0
        %467 = vmatpush1.msra.mxu0 %v323
        %468 = vmatprep.subr.mxu0 0.0
        %469 = vmatpush1.msra.mxu0 %v342
        %470 = vmatprep.subr.mxu0 0.0
        %471 = vmatpush1.msra.mxu0 %v341
        %472 = vmatprep.subr.mxu0 0.0
        %473 = vmatpush2.msra.mxu0 0.0
        %474 = vmatprep.subr.mxu0 0.0
        %475 = vmatpush2.msra.mxu0 0.0
        %476 = vmatprep.subr.mxu0 0.0
        %477 = vmatpush2.msra.mxu0 0.0
        %478 = vmatprep.subr.mxu0 0.0
        %479 = vmatpush2.msra.mxu0 0.0
        %480 = vmatprep.subr.mxu0 0.0
        %481 = vmatpush2.msra.mxu0 0.0
        %482 = vmatprep.subr.mxu0 0.0
        %483 = vmatpush2.msra.mxu0 0.0
        %484 = vmatprep.subr.mxu0 0.0
        %485 = vmatpush2.msra.mxu0 0.0
        %486 = vmatprep.subr.mxu0 0.0
        %487 = vmatpush2.msra.mxu0 0.0
        %488 = vmatprep.subr.mxu0 0.0
        %489 = vmatpush2.msra.mxu0 0.0
        %490 = vmatprep.subr.mxu0 0.0
        %491 = vmatpush2.msra.mxu0 0.0
        %492 = vmatprep.subr.mxu0 0.0
        %493 = vmatpush2.msra.mxu0 0.0
        %494 = vmatprep.subr.mxu0 0.0
        %495 = vmatpush2.msra.mxu0 0.0
        %496 = vmatprep.subr.mxu0 0.0
        %497 = vmatpush2.msra.mxu0 0.0
        %498 = vmatprep.subr.mxu0 0.0
        %499 = vmatpush2.msra.mxu0 0.0
        %500 = vmatprep.subr.mxu0 0.0
        %501 = vmatpush2.msra.mxu0 0.0
        %502 = vmatprep.subr.mxu0 0.0
        %503 = vmatpush2.msra.mxu0 0.0
        %504 = vmatprep.mubr.f32.mxu0 0.0
        %505 = vmatmul.mubr.f32.gmra.mxu0 %v417
        %v506 = vpop.f32.mrf.mxu0
        %v507 = vadd.f32 %v378, %v506
        %v508 = vpop.f32.mrf.mxu0
        %509 = vmatprep.mubr.f32.mxu0 0.0
        %510 = vmatmul.mubr.f32.gmra.mxu0 %v420
        %v511 = vpop.f32.mrf.mxu0
        %v512 = vadd.f32 %v383, %v511
        %v513 = vpop.f32.mrf.mxu0
        %514 = vmatprep.mubr.f32.mxu0 0.0
        %515 = vmatmul.mubr.f32.gmra.mxu0 %v423
        %v516 = vpop.f32.mrf.mxu0
        %v517 = vadd.f32 %v388, %v516
        %v518 = vpop.f32.mrf.mxu0
        %519 = vmatprep.mubr.f32.mxu0 0.0
        %520 = vmatmul.mubr.f32.gmra.mxu0 %v426
        %v521 = vpop.f32.mrf.mxu0
        %v522 = vadd.f32 %v393, %v521
        %v523 = vpop.f32.mrf.mxu0
        %524 = vmatprep.mubr.f32.mxu0 0.0
        %525 = vmatmul.mubr.f32.gmra.mxu0 %v429
        %v526 = vpop.f32.mrf.mxu0
        %v527 = vadd.f32 %v398, %v526
        %v528 = vpop.f32.mrf.mxu0
        %529 = vmatprep.mubr.f32.mxu0 0.0
        %530 = vmatmul.mubr.f32.gmra.mxu0 %v432
        %v531 = vpop.f32.mrf.mxu0
        %v532 = vadd.f32 %v403, %v531
        %v533 = vpop.f32.mrf.mxu0
        %534 = vmatprep.mubr.f32.mxu0 0.0
        %535 = vmatmul.mubr.f32.gmra.mxu0 %v435
        %v536 = vpop.f32.mrf.mxu0
        %v537 = vadd.f32 %v408, %v536
        %v538 = vpop.f32.mrf.mxu0
        %539 = vmatprep.mubr.f32.mxu0 0.0
        %540 = vmatmul.mubr.f32.gmra.mxu0 %v438
        %v541 = vpop.f32.mrf.mxu0
        %v542 = vadd.f32 %v413, %v541
        %v543 = vpop.f32.mrf.mxu0
        %544 = vdwg.mxu0
        %v545 = vmul.f32 %v507, %v507
        %v546 = vmul.f32 %v512, %v512
        %v547 = vmul.f32 %v517, %v517
        %v548 = vmul.f32 %v522, %v522
        %v549 = vld [vmem:[%s4] sm:$0xff]
        %v550 = vld [vmem:[%s4 + $0x8] sm:$0xff]
        %v551 = vld [vmem:[%s4 + $0x10] sm:$0xff]
        %v552 = vld [vmem:[%s4 + $0x18] sm:$0xff]
        %vm553 = vcmask 261120
        %v555 = vsel %vm553, %v507, 0
        %v558 = vsel %vm553, %v512, 0
        %v561 = vsel %vm553, %v517, 0
        %v564 = vsel %vm553, %v522, 0
        %v567 = vsel %vm553, %v545, 0
        %v570 = vsel %vm553, %v546, 0
        %v573 = vsel %vm553, %v547, 0
        %v576 = vsel %vm553, %v548, 0
        %578 = vmatprep.subr.mxu0 0.0
        %579 = vmatpush1.msra.mxu0 0.0
        %580 = vmatprep.subr.mxu0 0.0
        %581 = vmatpush1.msra.mxu0 0.0
        %582 = vmatprep.subr.mxu0 0.0
        %583 = vmatpush1.msra.mxu0 0.0
        %584 = vmatprep.subr.mxu0 0.0
        %585 = vmatpush1.msra.mxu0 0.0
        %586 = vmatprep.subr.mxu0 0.0
        %587 = vmatpush1.msra.mxu0 0.0
        %588 = vmatprep.subr.mxu0 0.0
        %589 = vmatpush1.msra.mxu0 0.0
        %590 = vmatprep.subr.mxu0 0.0
        %591 = vmatpush1.msra.mxu0 0.0
        %592 = vmatprep.subr.mxu0 0.0
        %593 = vmatpush1.msra.mxu0 0.0
        %594 = vmatprep.subr.mxu0 0.0
        %595 = vmatpush1.msra.mxu0 0.0
        %596 = vmatprep.subr.mxu0 0.0
        %597 = vmatpush1.msra.mxu0 0.0
        %598 = vmatprep.subr.mxu0 0.0
        %599 = vmatpush1.msra.mxu0 0.0
        %600 = vmatprep.subr.mxu0 0.0
        %601 = vmatpush1.msra.mxu0 0.0
        %602 = vmatprep.subr.mxu0 0.0
        %603 = vmatpush1.msra.mxu0 %v552
        %604 = vmatprep.subr.mxu0 0.0
        %605 = vmatpush1.msra.mxu0 %v551
        %606 = vmatprep.subr.mxu0 0.0
        %607 = vmatpush1.msra.mxu0 %v550
        %608 = vmatprep.subr.mxu0 0.0
        %609 = vmatpush1.msra.mxu0 %v549
        %610 = vmatprep.subr.mxu0 0.0
        %611 = vmatpush2.msra.mxu0 0.0
        %612 = vmatprep.subr.mxu0 0.0
        %613 = vmatpush2.msra.mxu0 0.0
        %614 = vmatprep.subr.mxu0 0.0
        %615 = vmatpush2.msra.mxu0 0.0
        %616 = vmatprep.subr.mxu0 0.0
        %617 = vmatpush2.msra.mxu0 0.0
        %618 = vmatprep.subr.mxu0 0.0
        %619 = vmatpush2.msra.mxu0 0.0
        %620 = vmatprep.subr.mxu0 0.0
        %621 = vmatpush2.msra.mxu0 0.0
        %622 = vmatprep.subr.mxu0 0.0
        %623 = vmatpush2.msra.mxu0 0.0
        %624 = vmatprep.subr.mxu0 0.0
        %625 = vmatpush2.msra.mxu0 0.0
        %626 = vmatprep.subr.mxu0 0.0
        %627 = vmatpush2.msra.mxu0 0.0
        %628 = vmatprep.subr.mxu0 0.0
        %629 = vmatpush2.msra.mxu0 0.0
        %630 = vmatprep.subr.mxu0 0.0
        %631 = vmatpush2.msra.mxu0 0.0
        %632 = vmatprep.subr.mxu0 0.0
        %633 = vmatpush2.msra.mxu0 0.0
        %634 = vmatprep.subr.mxu0 0.0
        %635 = vmatpush2.msra.mxu0 0.0
        %636 = vmatprep.subr.mxu0 0.0
        %637 = vmatpush2.msra.mxu0 0.0
        %638 = vmatprep.subr.mxu0 0.0
        %639 = vmatpush2.msra.mxu0 0.0
        %640 = vmatprep.subr.mxu0 0.0
        %641 = vmatpush2.msra.mxu0 0.0
        %642 = vmatprep.mubr.f32.mxu0 0.0
        %643 = vmatmul.mubr.f32.gmra.mxu0 %v555
        %v644 = vpop.f32.mrf.mxu0
        %v645 = vadd.f32 0.0, %v644
        %v646 = vpop.f32.mrf.mxu0
        %647 = vmatprep.mubr.f32.mxu0 0.0
        %648 = vmatmul.mubr.f32.gmra.mxu0 %v558
        %v649 = vpop.f32.mrf.mxu0
        %v650 = vadd.f32 0.0, %v649
        %v651 = vpop.f32.mrf.mxu0
        %652 = vmatprep.mubr.f32.mxu0 0.0
        %653 = vmatmul.mubr.f32.gmra.mxu0 %v561
        %v654 = vpop.f32.mrf.mxu0
        %v655 = vadd.f32 0.0, %v654
        %v656 = vpop.f32.mrf.mxu0
        %657 = vmatprep.mubr.f32.mxu0 0.0
        %658 = vmatmul.mubr.f32.gmra.mxu0 %v564
        %v659 = vpop.f32.mrf.mxu0
        %v660 = vadd.f32 0.0, %v659
        %v661 = vpop.f32.mrf.mxu0
        %662 = vmatprep.mubr.f32.mxu0 0.0
        %663 = vmatmul.mubr.f32.gmra.mxu0 %v567
        %v664 = vpop.f32.mrf.mxu0
        %v665 = vadd.f32 0.0, %v664
        %v666 = vpop.f32.mrf.mxu0
        %667 = vmatprep.mubr.f32.mxu0 0.0
        %668 = vmatmul.mubr.f32.gmra.mxu0 %v570
        %v669 = vpop.f32.mrf.mxu0
        %v670 = vadd.f32 0.0, %v669
        %v671 = vpop.f32.mrf.mxu0
        %672 = vmatprep.mubr.f32.mxu0 0.0
        %673 = vmatmul.mubr.f32.gmra.mxu0 %v573
        %v674 = vpop.f32.mrf.mxu0
        %v675 = vadd.f32 0.0, %v674
        %v676 = vpop.f32.mrf.mxu0
        %677 = vmatprep.mubr.f32.mxu0 0.0
        %678 = vmatmul.mubr.f32.gmra.mxu0 %v576
        %v679 = vpop.f32.mrf.mxu0
        %v680 = vadd.f32 0.0, %v679
        %v681 = vpop.f32.mrf.mxu0
        %682 = vdwg.mxu0
        %v683 = vld [vmem:[#allocation4] sm:$0xff]
        %v684 = vld [vmem:[#allocation4 + $0x8] sm:$0xff]
        %v685 = vld [vmem:[#allocation4 + $0x10] sm:$0xff]
        %v686 = vld [vmem:[#allocation4 + $0x18] sm:$0xff]
        %v687 = vld [vmem:[#allocation4 + $0x20] sm:$0xff]
        %v688 = vld [vmem:[#allocation4 + $0x28] sm:$0xff]
        %v689 = vld [vmem:[#allocation4 + $0x30] sm:$0xff]
        %v690 = vld [vmem:[#allocation4 + $0x38] sm:$0xff]
        %v692 = vsel %vm415, %v683, 0
        %v695 = vsel %vm415, %v684, 0
        %v698 = vsel %vm415, %v685, 0
        %v701 = vsel %vm415, %v686, 0
        %v704 = vsel %vm415, %v687, 0
        %v707 = vsel %vm415, %v688, 0
        %v710 = vsel %vm415, %v689, 0
        %v713 = vsel %vm415, %v690, 0
        %715 = vmatprep.subr.mxu0 0.0
        %716 = vmatpush1.msra.mxu0 0.0
        %717 = vmatprep.subr.mxu0 0.0
        %718 = vmatpush1.msra.mxu0 0.0
        %719 = vmatprep.subr.mxu0 0.0
        %720 = vmatpush1.msra.mxu0 0.0
        %721 = vmatprep.subr.mxu0 0.0
        %722 = vmatpush1.msra.mxu0 0.0
        %723 = vmatprep.subr.mxu0 0.0
        %724 = vmatpush1.msra.mxu0 0.0
        %725 = vmatprep.subr.mxu0 0.0
        %726 = vmatpush1.msra.mxu0 0.0
        %727 = vmatprep.subr.mxu0 0.0
        %728 = vmatpush1.msra.mxu0 0.0
        %729 = vmatprep.subr.mxu0 0.0
        %730 = vmatpush1.msra.mxu0 0.0
        %731 = vmatprep.subr.mxu0 0.0
        %732 = vmatpush1.msra.mxu0 %v680
        %733 = vmatprep.subr.mxu0 0.0
        %734 = vmatpush1.msra.mxu0 %v675
        %735 = vmatprep.subr.mxu0 0.0
        %736 = vmatpush1.msra.mxu0 %v670
        %737 = vmatprep.subr.mxu0 0.0
        %738 = vmatpush1.msra.mxu0 %v665
        %739 = vmatprep.subr.mxu0 0.0
        %740 = vmatpush1.msra.mxu0 %v660
        %741 = vmatprep.subr.mxu0 0.0
        %742 = vmatpush1.msra.mxu0 %v655
        %743 = vmatprep.subr.mxu0 0.0
        %744 = vmatpush1.msra.mxu0 %v650
        %745 = vmatprep.subr.mxu0 0.0
        %746 = vmatpush1.msra.mxu0 %v645
        %747 = vmatprep.subr.mxu0 0.0
        %748 = vmatpush2.msra.mxu0 0.0
        %749 = vmatprep.subr.mxu0 0.0
        %750 = vmatpush2.msra.mxu0 0.0
        %751 = vmatprep.subr.mxu0 0.0
        %752 = vmatpush2.msra.mxu0 0.0
        %753 = vmatprep.subr.mxu0 0.0
        %754 = vmatpush2.msra.mxu0 0.0
        %755 = vmatprep.subr.mxu0 0.0
        %756 = vmatpush2.msra.mxu0 0.0
        %757 = vmatprep.subr.mxu0 0.0
        %758 = vmatpush2.msra.mxu0 0.0
        %759 = vmatprep.subr.mxu0 0.0
        %760 = vmatpush2.msra.mxu0 0.0
        %761 = vmatprep.subr.mxu0 0.0
        %762 = vmatpush2.msra.mxu0 0.0
        %763 = vmatprep.subr.mxu0 0.0
        %764 = vmatpush2.msra.mxu0 0.0
        %765 = vmatprep.subr.mxu0 0.0
        %766 = vmatpush2.msra.mxu0 0.0
        %767 = vmatprep.subr.mxu0 0.0
        %768 = vmatpush2.msra.mxu0 0.0
        %769 = vmatprep.subr.mxu0 0.0
        %770 = vmatpush2.msra.mxu0 0.0
        %771 = vmatprep.subr.mxu0 0.0
        %772 = vmatpush2.msra.mxu0 0.0
        %773 = vmatprep.subr.mxu0 0.0
        %774 = vmatpush2.msra.mxu0 0.0
        %775 = vmatprep.subr.mxu0 0.0
        %776 = vmatpush2.msra.mxu0 0.0
        %777 = vmatprep.subr.mxu0 0.0
        %778 = vmatpush2.msra.mxu0 0.0
        %779 = vmatprep.mubr.f32.mxu0 0.0
        %780 = vmatmul.mubr.f32.gmra.mxu0 %v692
        %v781 = vpop.f32.mrf.mxu0
        %v782 = vadd.f32 0.0, %v781
        %v783 = vpop.f32.mrf.mxu0
        %784 = vmatprep.mubr.f32.mxu0 0.0
        %785 = vmatmul.mubr.f32.gmra.mxu0 %v695
        %v786 = vpop.f32.mrf.mxu0
        %v787 = vadd.f32 0.0, %v786
        %v788 = vpop.f32.mrf.mxu0
        %789 = vmatprep.mubr.f32.mxu0 0.0
        %790 = vmatmul.mubr.f32.gmra.mxu0 %v698
        %v791 = vpop.f32.mrf.mxu0
        %v792 = vadd.f32 0.0, %v791
        %v793 = vpop.f32.mrf.mxu0
        %794 = vmatprep.mubr.f32.mxu0 0.0
        %795 = vmatmul.mubr.f32.gmra.mxu0 %v701
        %v796 = vpop.f32.mrf.mxu0
        %v797 = vadd.f32 0.0, %v796
        %v798 = vpop.f32.mrf.mxu0
        %799 = vmatprep.mubr.f32.mxu0 0.0
        %800 = vmatmul.mubr.f32.gmra.mxu0 %v704
        %v801 = vpop.f32.mrf.mxu0
        %v802 = vadd.f32 0.0, %v801
        %v803 = vpop.f32.mrf.mxu0
        %804 = vmatprep.mubr.f32.mxu0 0.0
        %805 = vmatmul.mubr.f32.gmra.mxu0 %v707
        %v806 = vpop.f32.mrf.mxu0
        %v807 = vadd.f32 0.0, %v806
        %v808 = vpop.f32.mrf.mxu0
        %809 = vmatprep.mubr.f32.mxu0 0.0
        %810 = vmatmul.mubr.f32.gmra.mxu0 %v710
        %v811 = vpop.f32.mrf.mxu0
        %v812 = vadd.f32 0.0, %v811
        %v813 = vpop.f32.mrf.mxu0
        %814 = vmatprep.mubr.f32.mxu0 0.0
        %815 = vmatmul.mubr.f32.gmra.mxu0 %v713
        %v816 = vpop.f32.mrf.mxu0
        %v817 = vadd.f32 0.0, %v816
        %v818 = vpop.f32.mrf.mxu0
        %819 = vdwg.mxu0
        %v820 = vmul.f32 %v782, %v782
        %v821 = vmul.f32 %v787, %v787
        %v822 = vmul.f32 %v792, %v792
        %v823 = vmul.f32 %v797, %v797
        %v824 = vsub.f32 %v802, %v820
        %v825 = vsub.f32 %v807, %v821
        %v826 = vsub.f32 %v812, %v822
        %v827 = vsub.f32 %v817, %v823
        %v828 = vadd.f32 %v824, 1e-05
        %v829 = vadd.f32 %v825, 1e-05
        %v830 = vadd.f32 %v826, 1e-05
        %v831 = vadd.f32 %v827, 1e-05
        %v832 = vrsqrt.pop %v828
        %v833 = vrsqrt.pop %v829
        %v834 = vrsqrt.pop %v830
        %v835 = vrsqrt.pop %v831
        %v836 = vld [vmem:[%s2] sm:$0xff]
        %v837 = vld [vmem:[%s2 + $0x8] sm:$0xff]
        %v838 = vld [vmem:[%s2 + $0x10] sm:$0xff]
        %v839 = vld [vmem:[%s2 + $0x18] sm:$0xff]
        %841 = vset.pattern.permute.xlu0 1
        %842 = vperm.xlu0 %841, %v836
        %v843 = vpop.permute.xlu0 %842
        %846 = vset.pattern.permute.xlu0 1
        %847 = vperm.xlu0 %846, %v837
        %v848 = vpop.permute.xlu0 %847
        %851 = vset.pattern.permute.xlu0 1
        %852 = vperm.xlu0 %851, %v838
        %v853 = vpop.permute.xlu0 %852
        %856 = vset.pattern.permute.xlu0 1
        %857 = vperm.xlu0 %856, %v839
        %v858 = vpop.permute.xlu0 %857
        %v860 = vmul.f32 %v843, %v832
        %v861 = vmul.f32 %v848, %v833
        %v862 = vmul.f32 %v853, %v834
        %v863 = vmul.f32 %v858, %v835
        %v864 = vmul.f32 %v782, %v860
        %v865 = vmul.f32 %v787, %v861
        %v866 = vmul.f32 %v792, %v862
        %v867 = vmul.f32 %v797, %v863
        %868 = vset.pattern.permute.xlu0 2
        %869 = vperm.xlu0 %868, %v836
        %v870 = vpop.permute.xlu0 %869
        %872 = vset.pattern.permute.xlu0 2
        %873 = vperm.xlu0 %872, %v837
        %v874 = vpop.permute.xlu0 %873
        %876 = vset.pattern.permute.xlu0 2
        %877 = vperm.xlu0 %876, %v838
        %v878 = vpop.permute.xlu0 %877
        %880 = vset.pattern.permute.xlu0 2
        %881 = vperm.xlu0 %880, %v839
        %v882 = vpop.permute.xlu0 %881
        %v884 = vsub.f32 %v870, %v864
        %v885 = vsub.f32 %v874, %v865
        %v886 = vsub.f32 %v878, %v866
        %v887 = vsub.f32 %v882, %v867
        %v888 = vld [vmem:[%s5] sm:$0xff]
        %vm889 = vcmask 64512
        %v891 = vsel %vm889, %v860, 0
        %v894 = vsel %vm889, %v861, 0
        %v897 = vsel %vm889, %v862, 0
        %v900 = vsel %vm889, %v863, 0
        %v903 = vsel %vm889, %v884, 0
        %v906 = vsel %vm889, %v885, 0
        %v909 = vsel %vm889, %v886, 0
        %v912 = vsel %vm889, %v887, 0
        %914 = vmatprep.subr.mxu0 0.0
        %915 = vmatpush1.msra.mxu0 0.0
        %916 = vmatprep.subr.mxu0 0.0
        %917 = vmatpush1.msra.mxu0 0.0
        %918 = vmatprep.subr.mxu0 0.0
        %919 = vmatpush1.msra.mxu0 0.0
        %920 = vmatprep.subr.mxu0 0.0
        %921 = vmatpush1.msra.mxu0 0.0
        %922 = vmatprep.subr.mxu0 0.0
        %923 = vmatpush1.msra.mxu0 0.0
        %924 = vmatprep.subr.mxu0 0.0
        %925 = vmatpush1.msra.mxu0 0.0
        %926 = vmatprep.subr.mxu0 0.0
        %927 = vmatpush1.msra.mxu0 0.0
        %928 = vmatprep.subr.mxu0 0.0
        %929 = vmatpush1.msra.mxu0 0.0
        %930 = vmatprep.subr.mxu0 0.0
        %931 = vmatpush1.msra.mxu0 0.0
        %932 = vmatprep.subr.mxu0 0.0
        %933 = vmatpush1.msra.mxu0 0.0
        %934 = vmatprep.subr.mxu0 0.0
        %935 = vmatpush1.msra.mxu0 0.0
        %936 = vmatprep.subr.mxu0 0.0
        %937 = vmatpush1.msra.mxu0 0.0
        %938 = vmatprep.subr.mxu0 0.0
        %939 = vmatpush1.msra.mxu0 0.0
        %940 = vmatprep.subr.mxu0 0.0
        %941 = vmatpush1.msra.mxu0 0.0
        %942 = vmatprep.subr.mxu0 0.0
        %943 = vmatpush1.msra.mxu0 0.0
        %944 = vmatprep.subr.mxu0 0.0
        %945 = vmatpush1.msra.mxu0 %v888
        %946 = vmatprep.subr.mxu0 0.0
        %947 = vmatpush2.msra.mxu0 0.0
        %948 = vmatprep.subr.mxu0 0.0
        %949 = vmatpush2.msra.mxu0 0.0
        %950 = vmatprep.subr.mxu0 0.0
        %951 = vmatpush2.msra.mxu0 0.0
        %952 = vmatprep.subr.mxu0 0.0
        %953 = vmatpush2.msra.mxu0 0.0
        %954 = vmatprep.subr.mxu0 0.0
        %955 = vmatpush2.msra.mxu0 0.0
        %956 = vmatprep.subr.mxu0 0.0
        %957 = vmatpush2.msra.mxu0 0.0
        %958 = vmatprep.subr.mxu0 0.0
        %959 = vmatpush2.msra.mxu0 0.0
        %960 = vmatprep.subr.mxu0 0.0
        %961 = vmatpush2.msra.mxu0 0.0
        %962 = vmatprep.subr.mxu0 0.0
        %963 = vmatpush2.msra.mxu0 0.0
        %964 = vmatprep.subr.mxu0 0.0
        %965 = vmatpush2.msra.mxu0 0.0
        %966 = vmatprep.subr.mxu0 0.0
        %967 = vmatpush2.msra.mxu0 0.0
        %968 = vmatprep.subr.mxu0 0.0
        %969 = vmatpush2.msra.mxu0 0.0
        %970 = vmatprep.subr.mxu0 0.0
        %971 = vmatpush2.msra.mxu0 0.0
        %972 = vmatprep.subr.mxu0 0.0
        %973 = vmatpush2.msra.mxu0 0.0
        %974 = vmatprep.subr.mxu0 0.0
        %975 = vmatpush2.msra.mxu0 0.0
        %976 = vmatprep.subr.mxu0 0.0
        %977 = vmatpush2.msra.mxu0 0.0
        %978 = vmatprep.mubr.f32.mxu0 0.0
        %979 = vmatmul.mubr.f32.gmra.mxu0 %v891
        %v980 = vpop.f32.mrf.mxu0
        %v981 = vadd.f32 0.0, %v980
        %v982 = vpop.f32.mrf.mxu0
        %983 = vmatprep.mubr.f32.mxu0 0.0
        %984 = vmatmul.mubr.f32.gmra.mxu0 %v894
        %v985 = vpop.f32.mrf.mxu0
        %v986 = vadd.f32 0.0, %v985
        %v987 = vpop.f32.mrf.mxu0
        %988 = vmatprep.mubr.f32.mxu0 0.0
        %989 = vmatmul.mubr.f32.gmra.mxu0 %v897
        %v990 = vpop.f32.mrf.mxu0
        %v991 = vadd.f32 0.0, %v990
        %v992 = vpop.f32.mrf.mxu0
        %993 = vmatprep.mubr.f32.mxu0 0.0
        %994 = vmatmul.mubr.f32.gmra.mxu0 %v900
        %v995 = vpop.f32.mrf.mxu0
        %v996 = vadd.f32 0.0, %v995
        %v997 = vpop.f32.mrf.mxu0
        %998 = vmatprep.mubr.f32.mxu0 0.0
        %999 = vmatmul.mubr.f32.gmra.mxu0 %v903
        %v1000 = vpop.f32.mrf.mxu0
        %v1001 = vadd.f32 0.0, %v1000
        %v1002 = vpop.f32.mrf.mxu0
        %1003 = vmatprep.mubr.f32.mxu0 0.0
        %1004 = vmatmul.mubr.f32.gmra.mxu0 %v906
        %v1005 = vpop.f32.mrf.mxu0
        %v1006 = vadd.f32 0.0, %v1005
        %v1007 = vpop.f32.mrf.mxu0
        %1008 = vmatprep.mubr.f32.mxu0 0.0
        %1009 = vmatmul.mubr.f32.gmra.mxu0 %v909
        %v1010 = vpop.f32.mrf.mxu0
        %v1011 = vadd.f32 0.0, %v1010
        %v1012 = vpop.f32.mrf.mxu0
        %1013 = vmatprep.mubr.f32.mxu0 0.0
        %1014 = vmatmul.mubr.f32.gmra.mxu0 %v912
        %v1015 = vpop.f32.mrf.mxu0
        %v1016 = vadd.f32 0.0, %v1015
        %v1017 = vpop.f32.mrf.mxu0
        %1018 = vdwg.mxu0
        %v1019 = vmul.f32 %v507, %v981
        %v1020 = vmul.f32 %v512, %v986
        %v1021 = vmul.f32 %v517, %v991
        %v1022 = vmul.f32 %v522, %v996
        %v1023 = vadd.f32 %v1019, %v1001
        %v1024 = vadd.f32 %v1020, %v1006
        %v1025 = vadd.f32 %v1021, %v1011
        %v1026 = vadd.f32 %v1022, %v1016
        %v1027 = vmax.f32 %v1023, 0.0
        %v1028 = vmax.f32 %v1024, 0.0
        %v1029 = vmax.f32 %v1025, 0.0
        %v1030 = vmax.f32 %v1026, 0.0
        %v1031 = vadd.f32 %v1027, %v527
        %v1032 = vadd.f32 %v1028, %v532
        %v1033 = vadd.f32 %v1029, %v537
        %v1034 = vadd.f32 %v1030, %v542
        %1035 = vst.msk [vmem:[%s308] sm:$0xff] %vm322, %v1031
        %1036 = vst.msk [vmem:[%s308 + $0x8] sm:$0xff] %vm322, %v1032
        %1037 = vst.msk [vmem:[%s308 + $0x10] sm:$0xff] %vm322, %v1033
        %1038 = vst.msk [vmem:[%s308 + $0x18] sm:$0xff] %vm322, %v1034
        %1043 = vrot.lane.b32.xlu0 %v1031, 112
        %v1044 = vpop.permute.xlu0 %1043
        %1045 = vrot.lane.b32.xlu0 %v1032, 112
        %v1046 = vpop.permute.xlu0 %1045
        %1047 = vrot.lane.b32.xlu0 %v1033, 112
        %v1048 = vpop.permute.xlu0 %1047
        %1049 = vrot.lane.b32.xlu0 %v1034, 112
        %v1050 = vpop.permute.xlu0 %1049
        %s1055 = scalar_lea.vmem %s308, 32
        %1056 = vst.msk [vmem:[%s1055] sm:$0xff] %vm322, %v1044
        %1057 = vst.msk [vmem:[%s1055 + $0x8] sm:$0xff] %vm322, %v1046
        %1058 = vst.msk [vmem:[%s1055 + $0x10] sm:$0xff] %vm322, %v1048
        %1059 = vst.msk [vmem:[%s1055 + $0x18] sm:$0xff] %vm322, %v1050
        %p1060 = scmp.lt.s32.totalorder %s20, 1
        %s1061 = scalar_select %p1060, %s20, 1
        %s1062 = smul.addr %s1061, 8
        %s1063 = smul.addr %s1062, 8
        %s1064 = scalar_lea.vmem %s7, %s1063
        // Predicated region
        $region57: #{tpu_custom_call.1} parent=47 // pred_check
          %p1065 = pneg %p190
        $region58: #{tpu_custom_call.1} parent=47 // pred_check_branch
          %1067 = sbr.rel (%p1065) target = $region60
        $region59: #{tpu_custom_call.1} parent=47 // pred_region
          _
        $region60: #{tpu_custom_call.1} parent=47 // pred_fallthru
          _
      $region48: #{tpu_custom_call.1} parent=5 // pred_fallthru
        _
      %p1068 = scmp.le.s32.totalorder 2, %s15
      // Predicated region
      $region61: #{tpu_custom_call.1} parent=5 // pred_check
        %p1069 = pneg %p1068
      $region62: #{tpu_custom_call.1} parent=5 // pred_check_branch
        %1071 = sbr.rel (%p1069) target = $region64
      $region63: #{tpu_custom_call.1} parent=5 // pred_region
        %s1072 = ssub.s32 %s15, 2
        // Predicated region
        $region65: #{tpu_custom_call.1} parent=63 // pred_check
          %p1073 = pneg %p196
        $region66: #{tpu_custom_call.1} parent=63 // pred_check_branch
          %1075 = sbr.rel (%p1073) target = $region68
        $region67: #{tpu_custom_call.1} parent=63 // pred_region
          %p1076 = scmp.lt.s32.totalorder %s21, 1
          %s1077 = scalar_select %p1076, %s21, 1
          %s1078 = smul.addr %s1077, 8
          %s1079 = smul.addr %s1078, 8
          %s1080 = scalar_lea.vmem %s7, %s1079
        $region68: #{tpu_custom_call.1} parent=63 // pred_fallthru
          _
      $region64: #{tpu_custom_call.1} parent=5 // pred_fallthru
        _
    $region6: #{tpu_custom_call.1} parent=1 // loop_footer
      %s19 = sadd.s32 1, %s15
    $region7: #{tpu_custom_call.1} parent=1 // loop_footer_branch
      %14 = sbr.rel target = $region3
    $region8: #{tpu_custom_call.1} parent=1 // loop_exit
      _
    %1081 = vsyncpa [#allocation3], 1
    %s1082 = scalar_lea.sflag [#allocation3], 1
    %1083 = vsyncpa %s1082, 1
    %1084 = vsyncpa [#allocation5], 1

</llo_original>
